<compile_context>
chip_gen: v6e
topology: v6e:2x2x1
jax: 0.10.0
libtpu: 0.0.40
codegen_flags: <defaults>
</compile_context>

<pallas_src>
import jax
import jax.numpy as jnp
from jax.experimental import pallas as pl
from jax.experimental.pallas import tpu as pltpu


def _round_up(x, m):
    return ((x + m - 1) // m) * m


def value_net_kernel(x_ref, w1_ref, b1_ref, w2_ref, b2_ref, o_ref):
    # Layer 1: MXU matmul (bf16 operands, f32 accumulate) + bias + ReLU (VPU).
    x = x_ref[...].astype(jnp.bfloat16)                               # (TB, num_inputs)
    h = jnp.dot(x, w1_ref[...], preferred_element_type=jnp.float32)   # (TB, H) f32
    h = jnp.maximum(h + b1_ref[...], 0.0)                             # (TB, H) + (1, H)
    # Layer 2: per-row dot with the (1, H) weight row — VPU multiply + lane reduce.
    v = jnp.sum(h * w2_ref[...], axis=-1, keepdims=True)              # (TB, 1) f32
    o_ref[...] = (v + b2_ref[0, 0]).astype(o_ref.dtype)


def value_network_forward(state, w1, b1, w2, b2, *, block_b=1024):
    """V(s) for a batch of states.

    state: (B, num_inputs) f32
    w1:    (num_inputs, hidden) f32  (transposed PyTorch linear1.weight)
    b1:    (hidden,) f32
    w2:    (hidden, 1) f32           (transposed PyTorch linear2.weight)
    b2:    (1,) f32
    returns (B, 1) f32
    """
    B, num_inputs = state.shape
    hidden = w1.shape[1]

    # Parameter plumbing (outside the kernel, one-time cost).
    w1_bf = w1.astype(jnp.bfloat16)                         # MXU-native operand
    b1_row = jnp.reshape(b1, (1, hidden)).astype(jnp.float32)
    w2_row = jnp.reshape(w2, (1, hidden)).astype(jnp.float32)
    b2_s = jnp.reshape(b2, (1, 1)).astype(jnp.float32)

    # Batch tile: multiple of 8 (sublane constraint), capped at block_b.
    tb = min(_round_up(block_b, 8), _round_up(B, 8))
    n_tiles = pl.cdiv(B, tb)
    b_pad = n_tiles * tb
    if b_pad != B:
        state = jnp.pad(state, ((0, b_pad - B), (0, 0)))

    flops = 2 * b_pad * num_inputs * hidden + 3 * b_pad * hidden
    bytes_accessed = (b_pad * num_inputs * 4          # state stream (f32 in HBM)
                      + w1_bf.size * 2                # bf16 weights
                      + b1_row.size * 4 + w2_row.size * 4 + 4
                      + b_pad * 4)                    # output stream

    out = pl.pallas_call(
        value_net_kernel,
        out_shape=jax.ShapeDtypeStruct((b_pad, 1), jnp.float32),
        grid=(n_tiles,),
        in_specs=[
            pl.BlockSpec((tb, num_inputs), lambda i: (i, 0)),      # state: streamed
            pl.BlockSpec((num_inputs, hidden), lambda i: (0, 0)),  # w1: VMEM-resident
            pl.BlockSpec((1, hidden), lambda i: (0, 0)),           # b1: VMEM-resident
            pl.BlockSpec((1, hidden), lambda i: (0, 0)),           # w2 row: VMEM-resident
            pl.BlockSpec((1, 1), lambda i: (0, 0),
                         memory_space=pltpu.MemorySpace.SMEM),     # b2: scalar in SMEM
        ],
        out_specs=pl.BlockSpec((tb, 1), lambda i: (i, 0)),
        compiler_params=pltpu.CompilerParams(
            dimension_semantics=("parallel",),
            vmem_limit_bytes=32 * 1024 * 1024,
        ),
        cost_estimate=pl.CostEstimate(
            flops=flops, transcendentals=0, bytes_accessed=bytes_accessed),
    )(state, w1_bf, b1_row, w2_row, b2_s)
    return out[:B]


def init_params(key, num_inputs, hidden_size):
    """Deterministic init mimicking nn.Linear default (U[-1/sqrt(fan_in), +])."""
    k1, k2, k3, k4 = jax.random.split(key, 4)
    bound1 = 1.0 / jnp.sqrt(num_inputs)
    bound2 = 1.0 / jnp.sqrt(hidden_size)
    # Stored as (in, out) so the kernel computes x @ W directly.
    w1 = jax.random.uniform(k1, (num_inputs, hidden_size), jnp.float32, -bound1, bound1)
    b1 = jax.random.uniform(k2, (hidden_size,), jnp.float32, -bound1, bound1)
    w2 = jax.random.uniform(k3, (hidden_size, 1), jnp.float32, -bound2, bound2)
    b2 = jax.random.uniform(k4, (1,), jnp.float32, -bound2, bound2)
    return w1, b1, w2, b2


if __name__ == "__main__":
    num_inputs = 8      # continuous-control observation dimension
    hidden_size = 32
    batch = 24          # small batch; block_b=8 exercises a 3-step pipelined grid

    key = jax.random.PRNGKey(0)
    k_params, k_state = jax.random.split(key)
    w1, b1, w2, b2 = init_params(k_params, num_inputs, hidden_size)
    state = jax.random.normal(k_state, (batch, num_inputs), jnp.float32)

    # Multi-tile (grid=(3,)) path and single-tile path.
    out_tiled = jax.block_until_ready(
        value_network_forward(state, w1, b1, w2, b2, block_b=8))
    out_full = jax.block_until_ready(
        value_network_forward(state, w1, b1, w2, b2))

    # Pure-JAX references.
    ref_f32 = jnp.maximum(state @ w1 + b1, 0.0) @ w2 + b2
    ref_mixed = (jnp.maximum(
        jnp.dot(state.astype(jnp.bfloat16), w1.astype(jnp.bfloat16),
                preferred_element_type=jnp.float32) + b1, 0.0) @ w2 + b2)

    assert out_tiled.shape == (batch, 1) and out_tiled.dtype == jnp.float32
    assert out_full.shape == (batch, 1)
    # Tight vs. the mixed-precision (bf16-MXU) reference, loose vs. pure f32.
    assert jnp.allclose(out_tiled, ref_mixed, atol=1e-4, rtol=1e-4)
    assert jnp.allclose(out_full, ref_mixed, atol=1e-4, rtol=1e-4)
    assert jnp.allclose(out_tiled, ref_f32, atol=2e-2, rtol=2e-2)
    assert jnp.allclose(out_full, ref_f32, atol=2e-2, rtol=2e-2)

    print("KERNEL_OK")
</pallas_src>

<mosaic_0001>
module attributes {stable_mosaic.version = 11 : i64} {
  func.func @value_net_kernel(%arg0: i32, %arg1: memref<8x8xf32, #tpu.memory_space<vmem>>, %arg2: memref<8x32xbf16, #tpu.memory_space<vmem>>, %arg3: memref<1x32xf32, #tpu.memory_space<vmem>>, %arg4: memref<1x32xf32, #tpu.memory_space<vmem>>, %arg5: memref<1x1xf32, #tpu.memory_space<smem>>, %arg6: memref<8x1xf32, #tpu.memory_space<vmem>>) attributes {dimension_semantics = [#tpu.dimension_semantics<parallel>], iteration_bounds = array<i64: 3>, scalar_prefetch = 0 : i64, scratch_operands = 0 : i64, tpu.core_type = #tpu.core_type<tc>, window_params = [{transform_indices = @transform_0, window_bounds = array<i64: 8, 8>}, {pipeline_mode = #tpu.pipeline_mode<synchronous>, transform_indices = @transform_1, window_bounds = array<i64: 8, 32>}, {pipeline_mode = #tpu.pipeline_mode<synchronous>, transform_indices = @transform_2, window_bounds = array<i64: 1, 32>}, {pipeline_mode = #tpu.pipeline_mode<synchronous>, transform_indices = @transform_3, window_bounds = array<i64: 1, 32>}, {transform_indices = @transform_4, window_bounds = array<i64: 1, 1>}, {transform_indices = @transform_5, window_bounds = array<i64: 8, 1>}]} {
    %c0 = arith.constant 0 : index
    %c0_0 = arith.constant 0 : index
    %0 = vector.load %arg1[%c0, %c0_0] : memref<8x8xf32, #tpu.memory_space<vmem>>, vector<8x8xf32>
    %1 = arith.truncf %0 : vector<8x8xf32> to vector<8x8xbf16>
    %c0_1 = arith.constant 0 : index
    %c0_2 = arith.constant 0 : index
    %2 = vector.load %arg2[%c0_1, %c0_2] : memref<8x32xbf16, #tpu.memory_space<vmem>>, vector<8x32xbf16>
    %cst = arith.constant dense<0.000000e+00> : vector<8x32xf32>
    %3 = tpu.matmul %1, %2, %cst {dimension_numbers = #tpu.dot_dimension_numbers<[1], [0], [0], [1], [0, 0, 1, 1], [], []>} : vector<8x8xbf16>, vector<8x32xbf16>, vector<8x32xf32> -> vector<8x32xf32>
    %c0_3 = arith.constant 0 : index
    %c0_4 = arith.constant 0 : index
    %4 = vector.load %arg3[%c0_3, %c0_4] : memref<1x32xf32, #tpu.memory_space<vmem>>, vector<1x32xf32>
    %5 = vector.broadcast %4 : vector<1x32xf32> to vector<8x32xf32>
    %6 = arith.addf %3, %5 : vector<8x32xf32>
    %cst_5 = arith.constant 0.000000e+00 : f32
    %7 = vector.broadcast %cst_5 : f32 to vector<8x32xf32>
    %8 = arith.maximumf %6, %7 : vector<8x32xf32>
    %c0_6 = arith.constant 0 : index
    %c0_7 = arith.constant 0 : index
    %9 = vector.load %arg4[%c0_6, %c0_7] : memref<1x32xf32, #tpu.memory_space<vmem>>, vector<1x32xf32>
    %10 = vector.broadcast %9 : vector<1x32xf32> to vector<8x32xf32>
    %11 = arith.mulf %8, %10 : vector<8x32xf32>
    %cst_8 = arith.constant dense<0.000000e+00> : vector<8xf32>
    %12 = vector.multi_reduction <add>, %11, %cst_8 [1] : vector<8x32xf32> to vector<8xf32>
    %13 = vector.shape_cast %12 : vector<8xf32> to vector<8x1xf32>
    %c0_9 = arith.constant 0 : index
    %c0_10 = arith.constant 0 : index
    %14 = memref.load %arg5[%c0_9, %c0_10] : memref<1x1xf32, #tpu.memory_space<smem>>
    %15 = vector.broadcast %14 : f32 to vector<8x1xf32>
    %16 = arith.addf %13, %15 : vector<8x1xf32>
    %c0_11 = arith.constant 0 : index
    %c0_12 = arith.constant 0 : index
    %17 = vector.load %arg6[%c0_11, %c0_12] : memref<8x1xf32, #tpu.memory_space<vmem>>, vector<8x1xf32>
    tpu.vector_store %arg6[%c0_11, %c0_12], %16 {strides = array<i32>} : memref<8x1xf32, #tpu.memory_space<vmem>>, vector<8x1xf32>,
    return
  }
  func.func @transform_0(%arg0: i32) -> (i32, i32) {
    %c0_i32 = arith.constant 0 : i32
    %c0_i32_0 = arith.constant 0 : i32
    return %arg0, %c0_i32 : i32, i32
  }
  func.func @transform_1(%arg0: i32) -> (i32, i32) {
    %c0_i32 = arith.constant 0 : i32
    %c0_i32_0 = arith.constant 0 : i32
    %c0_i32_1 = arith.constant 0 : i32
    return %c0_i32, %c0_i32_0 : i32, i32
  }
  func.func @transform_2(%arg0: i32) -> (i32, i32) {
    %c0_i32 = arith.constant 0 : i32
    %c0_i32_0 = arith.constant 0 : i32
    %c0_i32_1 = arith.constant 0 : i32
    return %c0_i32, %c0_i32_0 : i32, i32
  }
  func.func @transform_3(%arg0: i32) -> (i32, i32) {
    %c0_i32 = arith.constant 0 : i32
    %c0_i32_0 = arith.constant 0 : i32
    %c0_i32_1 = arith.constant 0 : i32
    return %c0_i32, %c0_i32_0 : i32, i32
  }
  func.func @transform_4(%arg0: i32) -> (i32, i32) {
    %c0_i32 = arith.constant 0 : i32
    %c0_i32_0 = arith.constant 0 : i32
    %c0_i32_1 = arith.constant 0 : i32
    return %c0_i32, %c0_i32_0 : i32, i32
  }
  func.func @transform_5(%arg0: i32) -> (i32, i32) {
    %c0_i32 = arith.constant 0 : i32
    %c0_i32_0 = arith.constant 0 : i32
    return %arg0, %c0_i32 : i32, i32
  }
}

</mosaic_0001>

<llo_original>
// kernel: tpu_custom_call.1
$region0: #{tpu_custom_call.1}
  #allocation0 [shape = 'u32[]', space=smem, size = 0x4, offset = 0x4, fixed_abs, tag = 'smem constant byte address 0x4 - core index']
  #allocation1 [shape = 'u32[144,128]{1,0:T(1,128)}', space=vmem, size = 0x12000, scoped, tag = 'internal scratch']
  #allocation2 [shape = 'f32[1,1]{1,0:T(1,128)S(6)}', space=smem, size = 0x200, scoped, tag = 'scoped memory for tpu_custom_call.1']
  %s0 = inlined_call_operand.vmem [shape: f32[24,8], index: 0, kind: input, shape index: {}]
  %s1 = inlined_call_operand.vmem [shape: bf16[8,32], index: 1, kind: input, shape index: {}]
  %s2 = inlined_call_operand.vmem [shape: f32[1,32], index: 2, kind: input, shape index: {}]
  %s3 = inlined_call_operand.vmem [shape: f32[1,32], index: 3, kind: input, shape index: {}]
  %s4 = inlined_call_operand.<no memory space> [shape: f32[1,1], index: 4, kind: input, shape index: {}]
  %s5 = inlined_call_operand.vmem [shape: f32[24,1], index: 5, kind: output, shape index: {}]
  %s6 = sld [smem:[#allocation0]]
  $region53: #{tpu_custom_call.1} parent=0
    _
  %s8 = ssub.s32 1, %s6
  %s9 = scalar_select 0, %s8, %s6
  %10 = sst [smem:[#allocation2]] %s4
  loop: start=0, step=1, limit=5
  $region2: #{tpu_custom_call.1} parent=0 // loop_pre_header
    _
  $region3: #{tpu_custom_call.1} parent=0 // loop_header
    %s12 = sphi 0, %s16
    %p13 = scmp.ge.s32.totalorder %s12, 5
    %s22 = sphi 0, %s24
    %s25 = sphi 0, %s22
    %s26 = sphi 0, %s25
    %s42 = sphi 0, %s26
    %s46 = sphi 0, %s46
    %s48 = sphi 0, %s46
    %s49 = sphi 0, %s48
    %s63 = sphi 0, %s49
    %s67 = sphi 0, %s67
    %s69 = sphi 0, %s67
    %s70 = sphi 0, %s69
    %s84 = sphi 0, %s70
    %s88 = sphi 0, %s88
    %s90 = sphi 0, %s88
    %s91 = sphi 0, %s90
    %s105 = sphi 0, %s91
    %s109 = sphi 0, %s109
    %s111 = sphi 0, %s109
    %s112 = sphi 0, %s111
    %s126 = sphi 0, %s112
    %s132 = sphi 0, %s134
    %s135 = sphi 0, %s132
    %s136 = sphi 0, %s135
    %s152 = sphi 0, %s136
  $region4: #{tpu_custom_call.1} parent=0 // loop_header_branch
    %15 = sbr.rel (%p13) target = $region8
  $region5: #{tpu_custom_call.1} parent=0 // loop_body
    %s17 = ssub.s32 %s12, 1
    %s18 = ssub.s32 %s12, 2
    %s19 = sadd.s32 %s12, 1
    %s20 = ssub.s32 %s12, %s19
    %p21 = scmp.eq.s32.totalorder %s20, 0
    %s23 = sadd.s32 %s22, 1
    %s24 = scalar_select %p21, %s22, %s23
    %p27 = pneg %p21
    %p28 = scmp.eq.s32.totalorder %s12, 2
    %p29 = por %p27, %p28
    %p30 = scmp.ne.s32.totalorder %s22, %s25
    %p31 = scmp.eq.s32.totalorder %s12, 0
    %p32 = por %p30, %p31
    %p33 = scmp.ne.s32.totalorder %s22, %s25
    %p34 = scmp.eq.s32.totalorder %s17, 2
    %p35 = por %p33, %p34
    %p36 = scmp.ne.s32.totalorder %s25, %s26
    %p37 = scmp.eq.s32.totalorder %s17, 0
    %p38 = por %p36, %p37
    %p39 = scmp.ne.s32.totalorder %s25, %s26
    %p40 = scmp.eq.s32.totalorder %s18, 2
    %p41 = por %p39, %p40
    %p43 = scmp.ne.s32.totalorder %s26, %s42
    %p44 = scmp.eq.s32.totalorder %s18, 0
    %p45 = por %p43, %p44
    %s47 = sadd.s32 %s46, 1
    %p50 = scmp.eq.s32.totalorder %s12, 2
    %p51 = scmp.ne.s32.totalorder %s46, %s48
    %p52 = scmp.eq.s32.totalorder %s12, 0
    %p53 = por %p51, %p52
    %p54 = scmp.ne.s32.totalorder %s46, %s48
    %p55 = scmp.eq.s32.totalorder %s17, 2
    %p56 = por %p54, %p55
    %p57 = scmp.ne.s32.totalorder %s48, %s49
    %p58 = scmp.eq.s32.totalorder %s17, 0
    %p59 = por %p57, %p58
    %p60 = scmp.ne.s32.totalorder %s48, %s49
    %p61 = scmp.eq.s32.totalorder %s18, 2
    %p62 = por %p60, %p61
    %p64 = scmp.ne.s32.totalorder %s49, %s63
    %p65 = scmp.eq.s32.totalorder %s18, 0
    %p66 = por %p64, %p65
    %s68 = sadd.s32 %s67, 1
    %p71 = scmp.eq.s32.totalorder %s12, 2
    %p72 = scmp.ne.s32.totalorder %s67, %s69
    %p73 = scmp.eq.s32.totalorder %s12, 0
    %p74 = por %p72, %p73
    %p75 = scmp.ne.s32.totalorder %s67, %s69
    %p76 = scmp.eq.s32.totalorder %s17, 2
    %p77 = por %p75, %p76
    %p78 = scmp.ne.s32.totalorder %s69, %s70
    %p79 = scmp.eq.s32.totalorder %s17, 0
    %p80 = por %p78, %p79
    %p81 = scmp.ne.s32.totalorder %s69, %s70
    %p82 = scmp.eq.s32.totalorder %s18, 2
    %p83 = por %p81, %p82
    %p85 = scmp.ne.s32.totalorder %s70, %s84
    %p86 = scmp.eq.s32.totalorder %s18, 0
    %p87 = por %p85, %p86
    %s89 = sadd.s32 %s88, 1
    %p92 = scmp.eq.s32.totalorder %s12, 2
    %p93 = scmp.ne.s32.totalorder %s88, %s90
    %p94 = scmp.eq.s32.totalorder %s12, 0
    %p95 = por %p93, %p94
    %p96 = scmp.ne.s32.totalorder %s88, %s90
    %p97 = scmp.eq.s32.totalorder %s17, 2
    %p98 = por %p96, %p97
    %p99 = scmp.ne.s32.totalorder %s90, %s91
    %p100 = scmp.eq.s32.totalorder %s17, 0
    %p101 = por %p99, %p100
    %p102 = scmp.ne.s32.totalorder %s90, %s91
    %p103 = scmp.eq.s32.totalorder %s18, 2
    %p104 = por %p102, %p103
    %p106 = scmp.ne.s32.totalorder %s91, %s105
    %p107 = scmp.eq.s32.totalorder %s18, 0
    %p108 = por %p106, %p107
    %s110 = sadd.s32 %s109, 1
    %p113 = scmp.eq.s32.totalorder %s12, 2
    %p114 = scmp.ne.s32.totalorder %s109, %s111
    %p115 = scmp.eq.s32.totalorder %s12, 0
    %p116 = por %p114, %p115
    %p117 = scmp.ne.s32.totalorder %s109, %s111
    %p118 = scmp.eq.s32.totalorder %s17, 2
    %p119 = por %p117, %p118
    %p120 = scmp.ne.s32.totalorder %s111, %s112
    %p121 = scmp.eq.s32.totalorder %s17, 0
    %p122 = por %p120, %p121
    %p123 = scmp.ne.s32.totalorder %s111, %s112
    %p124 = scmp.eq.s32.totalorder %s18, 2
    %p125 = por %p123, %p124
    %p127 = scmp.ne.s32.totalorder %s112, %s126
    %p128 = scmp.eq.s32.totalorder %s18, 0
    %p129 = por %p127, %p128
    %s130 = ssub.s32 %s12, %s19
    %p131 = scmp.eq.s32.totalorder %s130, 0
    %s133 = sadd.s32 %s132, 1
    %s134 = scalar_select %p131, %s132, %s133
    %p137 = pneg %p131
    %p138 = scmp.eq.s32.totalorder %s12, 2
    %p139 = por %p137, %p138
    %p140 = scmp.ne.s32.totalorder %s132, %s135
    %p141 = scmp.eq.s32.totalorder %s12, 0
    %p142 = por %p140, %p141
    %p143 = scmp.ne.s32.totalorder %s132, %s135
    %p144 = scmp.eq.s32.totalorder %s17, 2
    %p145 = por %p143, %p144
    %p146 = scmp.ne.s32.totalorder %s135, %s136
    %p147 = scmp.eq.s32.totalorder %s17, 0
    %p148 = por %p146, %p147
    %p149 = scmp.ne.s32.totalorder %s135, %s136
    %p150 = scmp.eq.s32.totalorder %s18, 2
    %p151 = por %p149, %p150
    %p153 = scmp.ne.s32.totalorder %s136, %s152
    %p154 = scmp.eq.s32.totalorder %s18, 0
    %p155 = por %p153, %p154
    %p156 = scmp.le.s32.totalorder 1, %s12
    %p157 = scmp.lt.s32.totalorder %s12, 4
    %p158 = pnand %p156, %p157
    %p159 = pneg %p158
    // Predicated region
    $region9: #{tpu_custom_call.1} parent=5 // pred_check
      _
    $region10: #{tpu_custom_call.1} parent=5 // pred_check_branch
      %161 = sbr.rel (%p158) target = $region12
    $region11: #{tpu_custom_call.1} parent=5 // pred_region
      %s162 = ssub.s32 %s12, 1
      // Predicated region
      $region13: #{tpu_custom_call.1} parent=11 // pred_check
        %p163 = pneg %p59
      $region14: #{tpu_custom_call.1} parent=11 // pred_check_branch
        %165 = sbr.rel (%p163) target = $region16
      $region15: #{tpu_custom_call.1} parent=11 // pred_region
        _
      $region16: #{tpu_custom_call.1} parent=11 // pred_fallthru
        _
      // Predicated region
      $region17: #{tpu_custom_call.1} parent=11 // pred_check
        %p166 = pneg %p80
      $region18: #{tpu_custom_call.1} parent=11 // pred_check_branch
        %168 = sbr.rel (%p166) target = $region20
      $region19: #{tpu_custom_call.1} parent=11 // pred_region
        _
      $region20: #{tpu_custom_call.1} parent=11 // pred_fallthru
        _
      // Predicated region
      $region21: #{tpu_custom_call.1} parent=11 // pred_check
        %p169 = pneg %p101
      $region22: #{tpu_custom_call.1} parent=11 // pred_check_branch
        %171 = sbr.rel (%p169) target = $region24
      $region23: #{tpu_custom_call.1} parent=11 // pred_region
        _
      $region24: #{tpu_custom_call.1} parent=11 // pred_fallthru
        _
      // Predicated region
      $region25: #{tpu_custom_call.1} parent=11 // pred_check
        %p172 = pneg %p122
      $region26: #{tpu_custom_call.1} parent=11 // pred_check_branch
        %174 = sbr.rel (%p172) target = $region28
      $region27: #{tpu_custom_call.1} parent=11 // pred_region
        _
      $region28: #{tpu_custom_call.1} parent=11 // pred_fallthru
        _
    $region12: #{tpu_custom_call.1} parent=5 // pred_fallthru
      _
    %p175 = scmp.lt.s32.totalorder %s12, 3
    // Predicated region
    $region29: #{tpu_custom_call.1} parent=5 // pred_check
      %p176 = pneg %p175
    $region30: #{tpu_custom_call.1} parent=5 // pred_check_branch
      %178 = sbr.rel (%p176) target = $region32
    $region31: #{tpu_custom_call.1} parent=5 // pred_region
      // Predicated region
      $region33: #{tpu_custom_call.1} parent=31 // pred_check
        %p179 = pneg %p32
      $region34: #{tpu_custom_call.1} parent=31 // pred_check_branch
        %181 = sbr.rel (%p179) target = $region36
      $region35: #{tpu_custom_call.1} parent=31 // pred_region
        %p182 = scmp.lt.s32.totalorder %s12, 2
        %s183 = scalar_select %p182, %s12, 2
        %s184 = smul.addr %s183, 8
        %s185 = scalar_lea.vmem %s0, %s184
      $region36: #{tpu_custom_call.1} parent=31 // pred_fallthru
        _
    $region32: #{tpu_custom_call.1} parent=5 // pred_fallthru
      _
    %p186 = scmp.le.s32.totalorder 1, %s12
    %p187 = scmp.lt.s32.totalorder %s12, 4
    %p188 = pnand %p186, %p187
    %p189 = pneg %p188
    // Predicated region
    $region37: #{tpu_custom_call.1} parent=5 // pred_check
      _
    $region38: #{tpu_custom_call.1} parent=5 // pred_check_branch
      %191 = sbr.rel (%p188) target = $region40
    $region39: #{tpu_custom_call.1} parent=5 // pred_region
      %s192 = ssub.s32 %s12, 1
      %p193 = scmp.lt.s32.totalorder %s17, 2
      %s194 = scalar_select %p193, %s17, 2
      %s195 = smul.addr %s194, 8
      %s196 = scalar_lea.vmem %s0, %s195
      %p197 = pneg %p38
      %p198 = pneg %p35
      %p199 = pneg %p59
      %p200 = pneg %p56
      %p201 = pneg %p80
      %p202 = pneg %p77
      %p203 = pneg %p101
      %p204 = pneg %p98
      %p205 = pneg %p122
      %p206 = pneg %p119
      %p207 = pneg %p148
      %p208 = pneg %p145
      %p209 = scmp.lt.s32.totalorder %s17, 2
      %s210 = scalar_select %p209, %s17, 2
      %s211 = smul.addr %s210, 8
      %s212 = scalar_lea.vmem %s5, %s211
      %p213 = scmp.lt.s32.totalorder %s17, 2
      %s214 = scalar_select %p213, %s17, 2
      %s215 = smul.addr %s214, 8
      %s216 = scalar_lea.vmem %s0, %s215
      %p217 = scmp.lt.s32.totalorder %s17, 2
      %s218 = scalar_select %p217, %s17, 2
      %s219 = smul.addr %s218, 8
      %s220 = scalar_lea.vmem %s5, %s219
      %v222 = vld [vmem:[%s216] sm:$0xff]
      %v223 = vpack.c.bf16 %v222, %v222
      %v224 = vld [vmem:[%s1] sm:$0xf]
      %v225 = vld [vmem:[%s2] sm:$0x1]
      %v227 = vlaneseq
      %v228 = vshrl.u32 %v227, 7
      %v229 = vsub.s32 0, %v228
      %v230 = vrot.slane %v225, %v229
      %vm232 = vcmask 64512
      %v234 = vsel %vm232, %v223, 0
      %vm236 = vcmask 1043456
      %v238 = vsel %vm236, %v224, 0
      %240 = vmatprep.subr.bf16.mxu0 0
      %241 = vmatpush1.bf16.msra.mxu0 0
      %242 = vmatprep.subr.bf16.mxu0 0
      %243 = vmatpush1.bf16.msra.mxu0 0
      %244 = vmatprep.subr.bf16.mxu0 0
      %245 = vmatpush1.bf16.msra.mxu0 0
      %246 = vmatprep.subr.bf16.mxu0 0
      %247 = vmatpush1.bf16.msra.mxu0 0
      %248 = vmatprep.subr.bf16.mxu0 0
      %249 = vmatpush1.bf16.msra.mxu0 0
      %250 = vmatprep.subr.bf16.mxu0 0
      %251 = vmatpush1.bf16.msra.mxu0 0
      %252 = vmatprep.subr.bf16.mxu0 0
      %253 = vmatpush1.bf16.msra.mxu0 0
      %254 = vmatprep.subr.bf16.mxu0 0
      %255 = vmatpush1.bf16.msra.mxu0 %v238
      %256 = vmatprep.subr.bf16.mxu0 0
      %257 = vmatpush2.bf16.msra.mxu0 0
      %258 = vmatprep.subr.bf16.mxu0 0
      %259 = vmatpush2.bf16.msra.mxu0 0
      %260 = vmatprep.subr.bf16.mxu0 0
      %261 = vmatpush2.bf16.msra.mxu0 0
      %262 = vmatprep.subr.bf16.mxu0 0
      %263 = vmatpush2.bf16.msra.mxu0 0
      %264 = vmatprep.subr.bf16.mxu0 0
      %265 = vmatpush2.bf16.msra.mxu0 0
      %266 = vmatprep.subr.bf16.mxu0 0
      %267 = vmatpush2.bf16.msra.mxu0 0
      %268 = vmatprep.subr.bf16.mxu0 0
      %269 = vmatpush2.bf16.msra.mxu0 0
      %270 = vmatprep.subr.bf16.mxu0 0
      %271 = vmatpush2.bf16.msra.mxu0 0
      %272 = vmatprep.mubr.bf16.mxu0 0
      %273 = vmatmul.mubr.bf16.gmra.mxu0 %v234
      %v274 = vpop.f32.mrf.mxu0
      %v275 = vadd.f32 %v230, %v274
      %v276 = vpop.f32.mrf.mxu0
      %v277 = vpop.f32.mrf.mxu0
      %v278 = vpop.f32.mrf.mxu0
      %279 = vdwg.mxu0
      %v280 = vmax.f32 %v275, 0.0
      %v281 = vld [vmem:[%s3] sm:$0x1]
      %v283 = vlaneseq
      %v284 = vshrl.u32 %v283, 7
      %v285 = vsub.s32 0, %v284
      %v286 = vrot.slane %v281, %v285
      %v288 = vmul.f32 %v280, %v286
      %vm289 = vcmask 261120
      %v290 = vsel %vm289, %v288, 0.0
      %291 = vadd.xlane.f32.xlu0 %v290
      %v292 = vpop.xlane.xlu0 %291
      %s293 = sld [smem:[#allocation2]]
      %v294 = vstv %s293
      %v295 = vadd.f32 %v292, %v294
      %vm296 = vcmask 7168
      %297 = vst.msk [vmem:[%s220] sm:$0xff] %vm296, %v295
      %p298 = scmp.lt.s32.totalorder %s17, 2
      %s299 = scalar_select %p298, %s17, 2
      %s300 = smul.addr %s299, 8
      %s301 = scalar_lea.vmem %s5, %s300
      // Predicated region
      $region41: #{tpu_custom_call.1} parent=39 // pred_check
        %p302 = pneg %p145
      $region42: #{tpu_custom_call.1} parent=39 // pred_check_branch
        %304 = sbr.rel (%p302) target = $region44
      $region43: #{tpu_custom_call.1} parent=39 // pred_region
        _
      $region44: #{tpu_custom_call.1} parent=39 // pred_fallthru
        _
    $region40: #{tpu_custom_call.1} parent=5 // pred_fallthru
      _
    %p305 = scmp.le.s32.totalorder 2, %s12
    // Predicated region
    $region45: #{tpu_custom_call.1} parent=5 // pred_check
      %p306 = pneg %p305
    $region46: #{tpu_custom_call.1} parent=5 // pred_check_branch
      %308 = sbr.rel (%p306) target = $region48
    $region47: #{tpu_custom_call.1} parent=5 // pred_region
      %s309 = ssub.s32 %s12, 2
      // Predicated region
      $region49: #{tpu_custom_call.1} parent=47 // pred_check
        %p310 = pneg %p151
      $region50: #{tpu_custom_call.1} parent=47 // pred_check_branch
        %312 = sbr.rel (%p310) target = $region52
      $region51: #{tpu_custom_call.1} parent=47 // pred_region
        %p313 = scmp.lt.s32.totalorder %s18, 2
        %s314 = scalar_select %p313, %s18, 2
        %s315 = smul.addr %s314, 8
        %s316 = scalar_lea.vmem %s5, %s315
      $region52: #{tpu_custom_call.1} parent=47 // pred_fallthru
        _
    $region48: #{tpu_custom_call.1} parent=5 // pred_fallthru
      _
  $region6: #{tpu_custom_call.1} parent=0 // loop_footer
    %s16 = sadd.s32 1, %s12
  $region7: #{tpu_custom_call.1} parent=0 // loop_footer_branch
    %11 = sbr.rel target = $region3
  $region8: #{tpu_custom_call.1} parent=0 // loop_exit
    _

</llo_original>
